<compile_context>
chip_gen: v5e
topology: v5e:2x2
jax: 0.10.0
libtpu: 0.0.40
codegen_flags: <defaults>
</compile_context>

<pallas_src>
import numpy as np
import jax
import jax.numpy as jnp
from jax.experimental import pallas as pl
from jax.experimental.pallas import tpu as pltpu


# ---------------------------------------------------------------------------
# Diffusion schedule buffers (same math as common.linear_beta_schedule and the
# register_buffer block in GaussianDiffusion.__init__), computed on host in
# float64 and cast to float32 — exactly like the PyTorch module does.
# ---------------------------------------------------------------------------
def make_diffusion_buffers(timesteps=2000, p2_loss_weight_gamma=1.0,
                           p2_loss_weight_k=1.0):
    scale = 1000.0 / timesteps
    betas = np.linspace(scale * 1e-4, scale * 0.02, timesteps, dtype=np.float64)
    alphas = 1.0 - betas
    alphas_cumprod = np.cumprod(alphas)
    sqrt_alphas_cumprod = np.sqrt(alphas_cumprod)
    sqrt_one_minus_alphas_cumprod = np.sqrt(1.0 - alphas_cumprod)
    p2_loss_weight = (p2_loss_weight_k
                      + alphas_cumprod / (1.0 - alphas_cumprod)) ** (-p2_loss_weight_gamma)
    return dict(
        sqrt_alphas_cumprod=jnp.asarray(sqrt_alphas_cumprod, jnp.float32),
        sqrt_one_minus_alphas_cumprod=jnp.asarray(sqrt_one_minus_alphas_cumprod,
                                                  jnp.float32),
        p2_loss_weight=jnp.asarray(p2_loss_weight, jnp.float32),
    )


def _pick_batch_tile(B, max_tb=8):
    """Largest batch tile (divisor of B, <= max_tb) that keeps grid length >= 2."""
    if B <= 1:
        return 1
    best = 1
    for cand in range(1, min(B, max_tb) + 1):
        if B % cand == 0 and B // cand >= 2:
            best = cand
    return best


# ---------------------------------------------------------------------------
# Pallas kernel: fused q_sample + denoiser (1x1 conv, VPU-unrolled) + l1 loss
# + p2 weighting. One grid step processes TB batch rows and writes one dense
# (1, 8, 128) block holding the partial weighted-loss sum for those rows.
# ---------------------------------------------------------------------------
def _make_p_losses_kernel(tb, C, HW):
    inv_elems = np.float32(1.0 / (C * HW))

    def kernel(coef_ref,        # SMEM (B, 3): [sqrt_ac, sqrt_1m_ac, p2_w] at t_b
               temb_ref,        # SMEM (B, C): sinusoidal time embedding
               w1_ref,          # SMEM (C, C): conv weights for x_t channels
               w2_ref,          # SMEM (C, C): conv weights for condition channels
               bias_ref,        # SMEM (C,)
               x_ref,           # VMEM (tb, C, HW) bf16  x_start
               cond_ref,        # VMEM (tb, C, HW) bf16  condition image
               noise_ref,       # VMEM (tb, C, HW) bf16
               out_ref):        # VMEM (1, 8, 128) f32   partial weighted-loss sum
        g = pl.program_id(0)
        step_sum = jnp.float32(0.0)

        for r in range(tb):                       # static unroll over batch rows
            gb = g * tb + r                       # global batch index
            a = coef_ref[gb, 0]                   # sqrt_alphas_cumprod[t_b]
            s = coef_ref[gb, 1]                   # sqrt_one_minus_alphas_cumprod[t_b]
            pw = coef_ref[gb, 2]                  # p2_loss_weight[t_b]

            x = x_ref[r].astype(jnp.float32)      # (C, HW), HW on the lane axis
            cd = cond_ref[r].astype(jnp.float32)
            nz = noise_ref[r].astype(jnp.float32)

            # q_sample: x_t = sqrt(ac_t) * x0 + sqrt(1 - ac_t) * noise
            xt = a * x + s * nz

            # model(concat(x_t, cond), t): 1x1 conv over 2C channels + bias +
            # time embedding, unrolled as scalar-broadcast VPU FMAs (no MXU).
            dacc = jnp.zeros((1, HW), jnp.float32)
            for c in range(C):
                row = w1_ref[0, c] * xt[0:1, :] + w2_ref[0, c] * cd[0:1, :]
                for k in range(1, C):
                    row = row + w1_ref[k, c] * xt[k:k + 1, :] \
                              + w2_ref[k, c] * cd[k:k + 1, :]
                row = row + (bias_ref[c] + temb_ref[gb, c])
                # objective 'pred_x0', l1 loss (reduction='none')
                dacc = dacc + jnp.abs(row - x[c:c + 1, :])

            # per-batch mean over elements, * p2_loss_weight[t_b]
            step_sum = step_sum + pw * (jnp.sum(dacc) * inv_elems)

        # lane/sublane-dense output block: unmasked stores, no per-step
        # 1-element masked writeback.
        out_ref[...] = jnp.full((1, 8, 128), step_sum, dtype=jnp.float32)

    return kernel


# ---------------------------------------------------------------------------
# Wrapper (glue: reshape, RNG, schedule gathers, final batch mean)
# ---------------------------------------------------------------------------
def diffusion_forward(img_nchw, cond_nchw, params, buffers, key,
                      *, batch_tile=None, return_aux=False):
    B, C, H, W = img_nchw.shape
    HW = H * W
    tb = batch_tile if batch_tile is not None else _pick_batch_tile(B)
    assert B % tb == 0
    G = B // tb

    # channels-first flattening: NCHW -> (B, C, H*W) is contiguous (no HBM
    # transpose pass); bf16 halves the DMA bytes of this memory-bound kernel.
    x = img_nchw.reshape(B, C, HW).astype(jnp.bfloat16)
    cond = cond_nchw.reshape(B, C, HW).astype(jnp.bfloat16)

    k_t, k_noise = jax.random.split(key)
    T = buffers['sqrt_alphas_cumprod'].shape[0]
    t = jax.random.randint(k_t, (B,), 0, T)                       # t ~ U{0..T-1}
    # TODO(synk): noise could be drawn in-kernel (pltpu.prng_seed +
    # pltpu.stateful_normal) to remove one full-size HBM input; kept host-side
    # here so a bit-exact f32 reference path exists for testing.
    noise = jax.random.normal(k_noise, (B, C, HW), jnp.float32).astype(jnp.bfloat16)

    # per-batch scalar coefficients (the `common.extract(...)` gathers)
    coef = jnp.stack([buffers['sqrt_alphas_cumprod'][t],
                      buffers['sqrt_one_minus_alphas_cumprod'][t],
                      buffers['p2_loss_weight'][t]], axis=-1).astype(jnp.float32)  # (B, 3)

    # deterministic sinusoidal time embedding for the synthetic denoiser
    freqs = 1.0 / (10000.0 ** (jnp.arange(C, dtype=jnp.float32) / C))
    temb = jnp.sin(t[:, None].astype(jnp.float32) * freqs[None, :])   # (B, C)

    w1 = params['w1'].astype(jnp.float32)
    w2 = params['w2'].astype(jnp.float32)
    bias = params['bias'].astype(jnp.float32).reshape(C)

    kernel = _make_p_losses_kernel(tb, C, HW)
    smem = pltpu.MemorySpace.SMEM

    per_step = pl.pallas_call(
        kernel,
        out_shape=jax.ShapeDtypeStruct((G, 8, 128), jnp.float32),
        grid_spec=pltpu.PrefetchScalarGridSpec(
            num_scalar_prefetch=0,
            grid=(G,),
            in_specs=[
                pl.BlockSpec(memory_space=smem),                     # coef (B, 3)
                pl.BlockSpec(memory_space=smem),                     # temb (B, C)
                pl.BlockSpec(memory_space=smem),                     # w1 (C, C)
                pl.BlockSpec(memory_space=smem),                     # w2 (C, C)
                pl.BlockSpec(memory_space=smem),                     # bias (C,)
                pl.BlockSpec((tb, C, HW), lambda g: (g, 0, 0)),      # x_start
                pl.BlockSpec((tb, C, HW), lambda g: (g, 0, 0)),      # condition
                pl.BlockSpec((tb, C, HW), lambda g: (g, 0, 0)),      # noise
            ],
            out_specs=pl.BlockSpec((1, 8, 128), lambda g: (g, 0, 0)),
        ),
        compiler_params=pltpu.CompilerParams(dimension_semantics=("parallel",)),
    )(coef, temb, w1, w2, bias, x, cond, noise)

    # loss.mean() over the batch (element mean + p2 weighting already in-kernel)
    loss = jnp.sum(per_step[:, 0, 0]) / B

    if return_aux:
        return loss, dict(x=x, cond=cond, noise=noise, coef=coef, temb=temb,
                          w1=w1, w2=w2, bias=bias)
    return loss


# ---------------------------------------------------------------------------
# Pure-JAX reference (same bf16-cast inputs, f32 compute) for tolerance checks.
# ---------------------------------------------------------------------------
def _reference_loss(aux):
    x = aux['x'].astype(jnp.float32)        # (B, C, HW)
    cd = aux['cond'].astype(jnp.float32)
    nz = aux['noise'].astype(jnp.float32)
    coef, temb = aux['coef'], aux['temb']
    w1, w2, bias = aux['w1'], aux['w2'], aux['bias']
    a = coef[:, 0][:, None, None]
    s = coef[:, 1][:, None, None]
    pw = coef[:, 2]
    xt = a * x + s * nz
    hp = jax.lax.Precision.HIGHEST
    out = (jnp.einsum('kc,bkp->bcp', w1, xt, precision=hp)
           + jnp.einsum('kc,bkp->bcp', w2, cd, precision=hp)
           + bias[None, :, None] + temb[:, :, None])
    per_b = jnp.mean(jnp.abs(out - x), axis=(1, 2))
    return jnp.mean(pw * per_b)


if __name__ == "__main__":
    B, C, H, W = 2, 4, 16, 16          # image_size=16, channels=4 (small synthetic config)
    key = jax.random.PRNGKey(0)
    k_img, k_cond, k_w1, k_w2, k_fwd = jax.random.split(key, 5)

    img = jax.random.normal(k_img, (B, C, H, W), jnp.float32)        # NCHW
    cond_img = jax.random.normal(k_cond, (B, C, H, W), jnp.float32)  # NCHW

    # deterministic synthetic denoiser parameters (1x1 conv: 2C -> C, plus bias)
    params = dict(
        w1=0.1 * jax.random.normal(k_w1, (C, C), jnp.float32),
        w2=0.1 * jax.random.normal(k_w2, (C, C), jnp.float32),
        bias=jnp.zeros((C,), jnp.float32),
    )

    buffers = make_diffusion_buffers(timesteps=2000)

    loss, aux = diffusion_forward(img, cond_img, params, buffers, k_fwd,
                                  return_aux=True)
    jax.block_until_ready(loss)
    assert loss.shape == () and jnp.isfinite(loss)

    ref = _reference_loss(aux)
    assert jnp.allclose(loss, ref, rtol=1e-2, atol=1e-3), (float(loss), float(ref))

    print("KERNEL_OK")
</pallas_src>

<mosaic_0001>
module attributes {stable_mosaic.version = 11 : i64} {
  func.func @kernel(%arg0: i32, %arg1: memref<2x3xf32, #tpu.memory_space<smem>>, %arg2: memref<2x4xf32, #tpu.memory_space<smem>>, %arg3: memref<4x4xf32, #tpu.memory_space<smem>>, %arg4: memref<4x4xf32, #tpu.memory_space<smem>>, %arg5: memref<4xf32, #tpu.memory_space<smem>>, %arg6: memref<1x4x256xbf16, #tpu.memory_space<vmem>>, %arg7: memref<1x4x256xbf16, #tpu.memory_space<vmem>>, %arg8: memref<1x4x256xbf16, #tpu.memory_space<vmem>>, %arg9: memref<1x8x128xf32, #tpu.memory_space<vmem>>) attributes {dimension_semantics = [#tpu.dimension_semantics<parallel>], iteration_bounds = array<i64: 2>, scalar_prefetch = 0 : i64, scratch_operands = 0 : i64, tpu.core_type = #tpu.core_type<tc>, window_params = [{transform_indices = @transform_0, window_bounds = array<i64: 2, 3>}, {transform_indices = @transform_1, window_bounds = array<i64: 2, 4>}, {transform_indices = @transform_2, window_bounds = array<i64: 4, 4>}, {transform_indices = @transform_3, window_bounds = array<i64: 4, 4>}, {transform_indices = @transform_4, window_bounds = array<i64: 4>}, {transform_indices = @transform_5, window_bounds = array<i64: 1, 4, 256>}, {transform_indices = @transform_6, window_bounds = array<i64: 1, 4, 256>}, {transform_indices = @transform_7, window_bounds = array<i64: 1, 4, 256>}, {transform_indices = @transform_8, window_bounds = array<i64: 1, 8, 128>}]} {
    %c1_i32 = arith.constant 1 : i32
    %0 = arith.muli %arg0, %c1_i32 : i32
    %c0_i32 = arith.constant 0 : i32
    %1 = arith.addi %0, %c0_i32 : i32
    %2 = arith.index_cast %1 : i32 to index
    %c0 = arith.constant 0 : index
    %3 = memref.load %arg1[%2, %c0] : memref<2x3xf32, #tpu.memory_space<smem>>
    %4 = arith.index_cast %1 : i32 to index
    %c1 = arith.constant 1 : index
    %5 = memref.load %arg1[%4, %c1] : memref<2x3xf32, #tpu.memory_space<smem>>
    %6 = arith.index_cast %1 : i32 to index
    %c2 = arith.constant 2 : index
    %7 = memref.load %arg1[%6, %c2] : memref<2x3xf32, #tpu.memory_space<smem>>
    %c0_0 = arith.constant 0 : index
    %c0_1 = arith.constant 0 : index
    %c0_2 = arith.constant 0 : index
    %8 = vector.load %arg6[%c0_0, %c0_1, %c0_2] : memref<1x4x256xbf16, #tpu.memory_space<vmem>>, vector<1x4x256xbf16>
    %9 = vector.shape_cast %8 : vector<1x4x256xbf16> to vector<4x256xbf16>
    %10 = arith.extf %9 : vector<4x256xbf16> to vector<4x256xf32>
    %c0_3 = arith.constant 0 : index
    %c0_4 = arith.constant 0 : index
    %c0_5 = arith.constant 0 : index
    %11 = vector.load %arg7[%c0_3, %c0_4, %c0_5] : memref<1x4x256xbf16, #tpu.memory_space<vmem>>, vector<1x4x256xbf16>
    %12 = vector.shape_cast %11 : vector<1x4x256xbf16> to vector<4x256xbf16>
    %13 = arith.extf %12 : vector<4x256xbf16> to vector<4x256xf32>
    %c0_6 = arith.constant 0 : index
    %c0_7 = arith.constant 0 : index
    %c0_8 = arith.constant 0 : index
    %14 = vector.load %arg8[%c0_6, %c0_7, %c0_8] : memref<1x4x256xbf16, #tpu.memory_space<vmem>>, vector<1x4x256xbf16>
    %15 = vector.shape_cast %14 : vector<1x4x256xbf16> to vector<4x256xbf16>
    %16 = arith.extf %15 : vector<4x256xbf16> to vector<4x256xf32>
    %17 = vector.broadcast %3 : f32 to vector<4x256xf32>
    %18 = arith.mulf %17, %10 : vector<4x256xf32>
    %19 = vector.broadcast %5 : f32 to vector<4x256xf32>
    %20 = arith.mulf %19, %16 : vector<4x256xf32>
    %21 = arith.addf %18, %20 : vector<4x256xf32>
    %cst = arith.constant 0.000000e+00 : f32
    %22 = vector.broadcast %cst : f32 to vector<1x256xf32>
    %c0_9 = arith.constant 0 : index
    %c0_10 = arith.constant 0 : index
    %23 = memref.load %arg3[%c0_9, %c0_10] : memref<4x4xf32, #tpu.memory_space<smem>>
    %24 = vector.extract_strided_slice %21 {offsets = [0, 0], sizes = [1, 256], strides = [1, 1]} : vector<4x256xf32> to vector<1x256xf32>
    %25 = vector.broadcast %23 : f32 to vector<1x256xf32>
    %26 = arith.mulf %25, %24 : vector<1x256xf32>
    %c0_11 = arith.constant 0 : index
    %c0_12 = arith.constant 0 : index
    %27 = memref.load %arg4[%c0_11, %c0_12] : memref<4x4xf32, #tpu.memory_space<smem>>
    %28 = vector.extract_strided_slice %13 {offsets = [0, 0], sizes = [1, 256], strides = [1, 1]} : vector<4x256xf32> to vector<1x256xf32>
    %29 = vector.broadcast %27 : f32 to vector<1x256xf32>
    %30 = arith.mulf %29, %28 : vector<1x256xf32>
    %31 = arith.addf %26, %30 : vector<1x256xf32>
    %c1_13 = arith.constant 1 : index
    %c0_14 = arith.constant 0 : index
    %32 = memref.load %arg3[%c1_13, %c0_14] : memref<4x4xf32, #tpu.memory_space<smem>>
    %33 = vector.extract_strided_slice %21 {offsets = [1, 0], sizes = [1, 256], strides = [1, 1]} : vector<4x256xf32> to vector<1x256xf32>
    %34 = vector.broadcast %32 : f32 to vector<1x256xf32>
    %35 = arith.mulf %34, %33 : vector<1x256xf32>
    %36 = arith.addf %31, %35 : vector<1x256xf32>
    %c1_15 = arith.constant 1 : index
    %c0_16 = arith.constant 0 : index
    %37 = memref.load %arg4[%c1_15, %c0_16] : memref<4x4xf32, #tpu.memory_space<smem>>
    %38 = vector.extract_strided_slice %13 {offsets = [1, 0], sizes = [1, 256], strides = [1, 1]} : vector<4x256xf32> to vector<1x256xf32>
    %39 = vector.broadcast %37 : f32 to vector<1x256xf32>
    %40 = arith.mulf %39, %38 : vector<1x256xf32>
    %41 = arith.addf %36, %40 : vector<1x256xf32>
    %c2_17 = arith.constant 2 : index
    %c0_18 = arith.constant 0 : index
    %42 = memref.load %arg3[%c2_17, %c0_18] : memref<4x4xf32, #tpu.memory_space<smem>>
    %43 = vector.extract_strided_slice %21 {offsets = [2, 0], sizes = [1, 256], strides = [1, 1]} : vector<4x256xf32> to vector<1x256xf32>
    %44 = vector.broadcast %42 : f32 to vector<1x256xf32>
    %45 = arith.mulf %44, %43 : vector<1x256xf32>
    %46 = arith.addf %41, %45 : vector<1x256xf32>
    %c2_19 = arith.constant 2 : index
    %c0_20 = arith.constant 0 : index
    %47 = memref.load %arg4[%c2_19, %c0_20] : memref<4x4xf32, #tpu.memory_space<smem>>
    %48 = vector.extract_strided_slice %13 {offsets = [2, 0], sizes = [1, 256], strides = [1, 1]} : vector<4x256xf32> to vector<1x256xf32>
    %49 = vector.broadcast %47 : f32 to vector<1x256xf32>
    %50 = arith.mulf %49, %48 : vector<1x256xf32>
    %51 = arith.addf %46, %50 : vector<1x256xf32>
    %c3 = arith.constant 3 : index
    %c0_21 = arith.constant 0 : index
    %52 = memref.load %arg3[%c3, %c0_21] : memref<4x4xf32, #tpu.memory_space<smem>>
    %53 = vector.extract_strided_slice %21 {offsets = [3, 0], sizes = [1, 256], strides = [1, 1]} : vector<4x256xf32> to vector<1x256xf32>
    %54 = vector.broadcast %52 : f32 to vector<1x256xf32>
    %55 = arith.mulf %54, %53 : vector<1x256xf32>
    %56 = arith.addf %51, %55 : vector<1x256xf32>
    %c3_22 = arith.constant 3 : index
    %c0_23 = arith.constant 0 : index
    %57 = memref.load %arg4[%c3_22, %c0_23] : memref<4x4xf32, #tpu.memory_space<smem>>
    %58 = vector.extract_strided_slice %13 {offsets = [3, 0], sizes = [1, 256], strides = [1, 1]} : vector<4x256xf32> to vector<1x256xf32>
    %59 = vector.broadcast %57 : f32 to vector<1x256xf32>
    %60 = arith.mulf %59, %58 : vector<1x256xf32>
    %61 = arith.addf %56, %60 : vector<1x256xf32>
    %c0_24 = arith.constant 0 : index
    %62 = memref.load %arg5[%c0_24] : memref<4xf32, #tpu.memory_space<smem>>
    %63 = arith.index_cast %1 : i32 to index
    %c0_25 = arith.constant 0 : index
    %64 = memref.load %arg2[%63, %c0_25] : memref<2x4xf32, #tpu.memory_space<smem>>
    %65 = arith.addf %62, %64 : f32
    %66 = vector.broadcast %65 : f32 to vector<1x256xf32>
    %67 = arith.addf %61, %66 : vector<1x256xf32>
    %68 = vector.extract_strided_slice %10 {offsets = [0, 0], sizes = [1, 256], strides = [1, 1]} : vector<4x256xf32> to vector<1x256xf32>
    %69 = arith.subf %67, %68 : vector<1x256xf32>
    %70 = math.absf %69 : vector<1x256xf32>
    %71 = arith.addf %22, %70 : vector<1x256xf32>
    %c0_26 = arith.constant 0 : index
    %c1_27 = arith.constant 1 : index
    %72 = memref.load %arg3[%c0_26, %c1_27] : memref<4x4xf32, #tpu.memory_space<smem>>
    %73 = vector.extract_strided_slice %21 {offsets = [0, 0], sizes = [1, 256], strides = [1, 1]} : vector<4x256xf32> to vector<1x256xf32>
    %74 = vector.broadcast %72 : f32 to vector<1x256xf32>
    %75 = arith.mulf %74, %73 : vector<1x256xf32>
    %c0_28 = arith.constant 0 : index
    %c1_29 = arith.constant 1 : index
    %76 = memref.load %arg4[%c0_28, %c1_29] : memref<4x4xf32, #tpu.memory_space<smem>>
    %77 = vector.extract_strided_slice %13 {offsets = [0, 0], sizes = [1, 256], strides = [1, 1]} : vector<4x256xf32> to vector<1x256xf32>
    %78 = vector.broadcast %76 : f32 to vector<1x256xf32>
    %79 = arith.mulf %78, %77 : vector<1x256xf32>
    %80 = arith.addf %75, %79 : vector<1x256xf32>
    %c1_30 = arith.constant 1 : index
    %c1_31 = arith.constant 1 : index
    %81 = memref.load %arg3[%c1_30, %c1_31] : memref<4x4xf32, #tpu.memory_space<smem>>
    %82 = vector.extract_strided_slice %21 {offsets = [1, 0], sizes = [1, 256], strides = [1, 1]} : vector<4x256xf32> to vector<1x256xf32>
    %83 = vector.broadcast %81 : f32 to vector<1x256xf32>
    %84 = arith.mulf %83, %82 : vector<1x256xf32>
    %85 = arith.addf %80, %84 : vector<1x256xf32>
    %c1_32 = arith.constant 1 : index
    %c1_33 = arith.constant 1 : index
    %86 = memref.load %arg4[%c1_32, %c1_33] : memref<4x4xf32, #tpu.memory_space<smem>>
    %87 = vector.extract_strided_slice %13 {offsets = [1, 0], sizes = [1, 256], strides = [1, 1]} : vector<4x256xf32> to vector<1x256xf32>
    %88 = vector.broadcast %86 : f32 to vector<1x256xf32>
    %89 = arith.mulf %88, %87 : vector<1x256xf32>
    %90 = arith.addf %85, %89 : vector<1x256xf32>
    %c2_34 = arith.constant 2 : index
    %c1_35 = arith.constant 1 : index
    %91 = memref.load %arg3[%c2_34, %c1_35] : memref<4x4xf32, #tpu.memory_space<smem>>
    %92 = vector.extract_strided_slice %21 {offsets = [2, 0], sizes = [1, 256], strides = [1, 1]} : vector<4x256xf32> to vector<1x256xf32>
    %93 = vector.broadcast %91 : f32 to vector<1x256xf32>
    %94 = arith.mulf %93, %92 : vector<1x256xf32>
    %95 = arith.addf %90, %94 : vector<1x256xf32>
    %c2_36 = arith.constant 2 : index
    %c1_37 = arith.constant 1 : index
    %96 = memref.load %arg4[%c2_36, %c1_37] : memref<4x4xf32, #tpu.memory_space<smem>>
    %97 = vector.extract_strided_slice %13 {offsets = [2, 0], sizes = [1, 256], strides = [1, 1]} : vector<4x256xf32> to vector<1x256xf32>
    %98 = vector.broadcast %96 : f32 to vector<1x256xf32>
    %99 = arith.mulf %98, %97 : vector<1x256xf32>
    %100 = arith.addf %95, %99 : vector<1x256xf32>
    %c3_38 = arith.constant 3 : index
    %c1_39 = arith.constant 1 : index
    %101 = memref.load %arg3[%c3_38, %c1_39] : memref<4x4xf32, #tpu.memory_space<smem>>
    %102 = vector.extract_strided_slice %21 {offsets = [3, 0], sizes = [1, 256], strides = [1, 1]} : vector<4x256xf32> to vector<1x256xf32>
    %103 = vector.broadcast %101 : f32 to vector<1x256xf32>
    %104 = arith.mulf %103, %102 : vector<1x256xf32>
    %105 = arith.addf %100, %104 : vector<1x256xf32>
    %c3_40 = arith.constant 3 : index
    %c1_41 = arith.constant 1 : index
    %106 = memref.load %arg4[%c3_40, %c1_41] : memref<4x4xf32, #tpu.memory_space<smem>>
    %107 = vector.extract_strided_slice %13 {offsets = [3, 0], sizes = [1, 256], strides = [1, 1]} : vector<4x256xf32> to vector<1x256xf32>
    %108 = vector.broadcast %106 : f32 to vector<1x256xf32>
    %109 = arith.mulf %108, %107 : vector<1x256xf32>
    %110 = arith.addf %105, %109 : vector<1x256xf32>
    %c1_42 = arith.constant 1 : index
    %111 = memref.load %arg5[%c1_42] : memref<4xf32, #tpu.memory_space<smem>>
    %112 = arith.index_cast %1 : i32 to index
    %c1_43 = arith.constant 1 : index
    %113 = memref.load %arg2[%112, %c1_43] : memref<2x4xf32, #tpu.memory_space<smem>>
    %114 = arith.addf %111, %113 : f32
    %115 = vector.broadcast %114 : f32 to vector<1x256xf32>
    %116 = arith.addf %110, %115 : vector<1x256xf32>
    %117 = vector.extract_strided_slice %10 {offsets = [1, 0], sizes = [1, 256], strides = [1, 1]} : vector<4x256xf32> to vector<1x256xf32>
    %118 = arith.subf %116, %117 : vector<1x256xf32>
    %119 = math.absf %118 : vector<1x256xf32>
    %120 = arith.addf %71, %119 : vector<1x256xf32>
    %c0_44 = arith.constant 0 : index
    %c2_45 = arith.constant 2 : index
    %121 = memref.load %arg3[%c0_44, %c2_45] : memref<4x4xf32, #tpu.memory_space<smem>>
    %122 = vector.extract_strided_slice %21 {offsets = [0, 0], sizes = [1, 256], strides = [1, 1]} : vector<4x256xf32> to vector<1x256xf32>
    %123 = vector.broadcast %121 : f32 to vector<1x256xf32>
    %124 = arith.mulf %123, %122 : vector<1x256xf32>
    %c0_46 = arith.constant 0 : index
    %c2_47 = arith.constant 2 : index
    %125 = memref.load %arg4[%c0_46, %c2_47] : memref<4x4xf32, #tpu.memory_space<smem>>
    %126 = vector.extract_strided_slice %13 {offsets = [0, 0], sizes = [1, 256], strides = [1, 1]} : vector<4x256xf32> to vector<1x256xf32>
    %127 = vector.broadcast %125 : f32 to vector<1x256xf32>
    %128 = arith.mulf %127, %126 : vector<1x256xf32>
    %129 = arith.addf %124, %128 : vector<1x256xf32>
    %c1_48 = arith.constant 1 : index
    %c2_49 = arith.constant 2 : index
    %130 = memref.load %arg3[%c1_48, %c2_49] : memref<4x4xf32, #tpu.memory_space<smem>>
    %131 = vector.extract_strided_slice %21 {offsets = [1, 0], sizes = [1, 256], strides = [1, 1]} : vector<4x256xf32> to vector<1x256xf32>
    %132 = vector.broadcast %130 : f32 to vector<1x256xf32>
    %133 = arith.mulf %132, %131 : vector<1x256xf32>
    %134 = arith.addf %129, %133 : vector<1x256xf32>
    %c1_50 = arith.constant 1 : index
    %c2_51 = arith.constant 2 : index
    %135 = memref.load %arg4[%c1_50, %c2_51] : memref<4x4xf32, #tpu.memory_space<smem>>
    %136 = vector.extract_strided_slice %13 {offsets = [1, 0], sizes = [1, 256], strides = [1, 1]} : vector<4x256xf32> to vector<1x256xf32>
    %137 = vector.broadcast %135 : f32 to vector<1x256xf32>
    %138 = arith.mulf %137, %136 : vector<1x256xf32>
    %139 = arith.addf %134, %138 : vector<1x256xf32>
    %c2_52 = arith.constant 2 : index
    %c2_53 = arith.constant 2 : index
    %140 = memref.load %arg3[%c2_52, %c2_53] : memref<4x4xf32, #tpu.memory_space<smem>>
    %141 = vector.extract_strided_slice %21 {offsets = [2, 0], sizes = [1, 256], strides = [1, 1]} : vector<4x256xf32> to vector<1x256xf32>
    %142 = vector.broadcast %140 : f32 to vector<1x256xf32>
    %143 = arith.mulf %142, %141 : vector<1x256xf32>
    %144 = arith.addf %139, %143 : vector<1x256xf32>
    %c2_54 = arith.constant 2 : index
    %c2_55 = arith.constant 2 : index
    %145 = memref.load %arg4[%c2_54, %c2_55] : memref<4x4xf32, #tpu.memory_space<smem>>
    %146 = vector.extract_strided_slice %13 {offsets = [2, 0], sizes = [1, 256], strides = [1, 1]} : vector<4x256xf32> to vector<1x256xf32>
    %147 = vector.broadcast %145 : f32 to vector<1x256xf32>
    %148 = arith.mulf %147, %146 : vector<1x256xf32>
    %149 = arith.addf %144, %148 : vector<1x256xf32>
    %c3_56 = arith.constant 3 : index
    %c2_57 = arith.constant 2 : index
    %150 = memref.load %arg3[%c3_56, %c2_57] : memref<4x4xf32, #tpu.memory_space<smem>>
    %151 = vector.extract_strided_slice %21 {offsets = [3, 0], sizes = [1, 256], strides = [1, 1]} : vector<4x256xf32> to vector<1x256xf32>
    %152 = vector.broadcast %150 : f32 to vector<1x256xf32>
    %153 = arith.mulf %152, %151 : vector<1x256xf32>
    %154 = arith.addf %149, %153 : vector<1x256xf32>
    %c3_58 = arith.constant 3 : index
    %c2_59 = arith.constant 2 : index
    %155 = memref.load %arg4[%c3_58, %c2_59] : memref<4x4xf32, #tpu.memory_space<smem>>
    %156 = vector.extract_strided_slice %13 {offsets = [3, 0], sizes = [1, 256], strides = [1, 1]} : vector<4x256xf32> to vector<1x256xf32>
    %157 = vector.broadcast %155 : f32 to vector<1x256xf32>
    %158 = arith.mulf %157, %156 : vector<1x256xf32>
    %159 = arith.addf %154, %158 : vector<1x256xf32>
    %c2_60 = arith.constant 2 : index
    %160 = memref.load %arg5[%c2_60] : memref<4xf32, #tpu.memory_space<smem>>
    %161 = arith.index_cast %1 : i32 to index
    %c2_61 = arith.constant 2 : index
    %162 = memref.load %arg2[%161, %c2_61] : memref<2x4xf32, #tpu.memory_space<smem>>
    %163 = arith.addf %160, %162 : f32
    %164 = vector.broadcast %163 : f32 to vector<1x256xf32>
    %165 = arith.addf %159, %164 : vector<1x256xf32>
    %166 = vector.extract_strided_slice %10 {offsets = [2, 0], sizes = [1, 256], strides = [1, 1]} : vector<4x256xf32> to vector<1x256xf32>
    %167 = arith.subf %165, %166 : vector<1x256xf32>
    %168 = math.absf %167 : vector<1x256xf32>
    %169 = arith.addf %120, %168 : vector<1x256xf32>
    %c0_62 = arith.constant 0 : index
    %c3_63 = arith.constant 3 : index
    %170 = memref.load %arg3[%c0_62, %c3_63] : memref<4x4xf32, #tpu.memory_space<smem>>
    %171 = vector.extract_strided_slice %21 {offsets = [0, 0], sizes = [1, 256], strides = [1, 1]} : vector<4x256xf32> to vector<1x256xf32>
    %172 = vector.broadcast %170 : f32 to vector<1x256xf32>
    %173 = arith.mulf %172, %171 : vector<1x256xf32>
    %c0_64 = arith.constant 0 : index
    %c3_65 = arith.constant 3 : index
    %174 = memref.load %arg4[%c0_64, %c3_65] : memref<4x4xf32, #tpu.memory_space<smem>>
    %175 = vector.extract_strided_slice %13 {offsets = [0, 0], sizes = [1, 256], strides = [1, 1]} : vector<4x256xf32> to vector<1x256xf32>
    %176 = vector.broadcast %174 : f32 to vector<1x256xf32>
    %177 = arith.mulf %176, %175 : vector<1x256xf32>
    %178 = arith.addf %173, %177 : vector<1x256xf32>
    %c1_66 = arith.constant 1 : index
    %c3_67 = arith.constant 3 : index
    %179 = memref.load %arg3[%c1_66, %c3_67] : memref<4x4xf32, #tpu.memory_space<smem>>
    %180 = vector.extract_strided_slice %21 {offsets = [1, 0], sizes = [1, 256], strides = [1, 1]} : vector<4x256xf32> to vector<1x256xf32>
    %181 = vector.broadcast %179 : f32 to vector<1x256xf32>
    %182 = arith.mulf %181, %180 : vector<1x256xf32>
    %183 = arith.addf %178, %182 : vector<1x256xf32>
    %c1_68 = arith.constant 1 : index
    %c3_69 = arith.constant 3 : index
    %184 = memref.load %arg4[%c1_68, %c3_69] : memref<4x4xf32, #tpu.memory_space<smem>>
    %185 = vector.extract_strided_slice %13 {offsets = [1, 0], sizes = [1, 256], strides = [1, 1]} : vector<4x256xf32> to vector<1x256xf32>
    %186 = vector.broadcast %184 : f32 to vector<1x256xf32>
    %187 = arith.mulf %186, %185 : vector<1x256xf32>
    %188 = arith.addf %183, %187 : vector<1x256xf32>
    %c2_70 = arith.constant 2 : index
    %c3_71 = arith.constant 3 : index
    %189 = memref.load %arg3[%c2_70, %c3_71] : memref<4x4xf32, #tpu.memory_space<smem>>
    %190 = vector.extract_strided_slice %21 {offsets = [2, 0], sizes = [1, 256], strides = [1, 1]} : vector<4x256xf32> to vector<1x256xf32>
    %191 = vector.broadcast %189 : f32 to vector<1x256xf32>
    %192 = arith.mulf %191, %190 : vector<1x256xf32>
    %193 = arith.addf %188, %192 : vector<1x256xf32>
    %c2_72 = arith.constant 2 : index
    %c3_73 = arith.constant 3 : index
    %194 = memref.load %arg4[%c2_72, %c3_73] : memref<4x4xf32, #tpu.memory_space<smem>>
    %195 = vector.extract_strided_slice %13 {offsets = [2, 0], sizes = [1, 256], strides = [1, 1]} : vector<4x256xf32> to vector<1x256xf32>
    %196 = vector.broadcast %194 : f32 to vector<1x256xf32>
    %197 = arith.mulf %196, %195 : vector<1x256xf32>
    %198 = arith.addf %193, %197 : vector<1x256xf32>
    %c3_74 = arith.constant 3 : index
    %c3_75 = arith.constant 3 : index
    %199 = memref.load %arg3[%c3_74, %c3_75] : memref<4x4xf32, #tpu.memory_space<smem>>
    %200 = vector.extract_strided_slice %21 {offsets = [3, 0], sizes = [1, 256], strides = [1, 1]} : vector<4x256xf32> to vector<1x256xf32>
    %201 = vector.broadcast %199 : f32 to vector<1x256xf32>
    %202 = arith.mulf %201, %200 : vector<1x256xf32>
    %203 = arith.addf %198, %202 : vector<1x256xf32>
    %c3_76 = arith.constant 3 : index
    %c3_77 = arith.constant 3 : index
    %204 = memref.load %arg4[%c3_76, %c3_77] : memref<4x4xf32, #tpu.memory_space<smem>>
    %205 = vector.extract_strided_slice %13 {offsets = [3, 0], sizes = [1, 256], strides = [1, 1]} : vector<4x256xf32> to vector<1x256xf32>
    %206 = vector.broadcast %204 : f32 to vector<1x256xf32>
    %207 = arith.mulf %206, %205 : vector<1x256xf32>
    %208 = arith.addf %203, %207 : vector<1x256xf32>
    %c3_78 = arith.constant 3 : index
    %209 = memref.load %arg5[%c3_78] : memref<4xf32, #tpu.memory_space<smem>>
    %210 = arith.index_cast %1 : i32 to index
    %c3_79 = arith.constant 3 : index
    %211 = memref.load %arg2[%210, %c3_79] : memref<2x4xf32, #tpu.memory_space<smem>>
    %212 = arith.addf %209, %211 : f32
    %213 = vector.broadcast %212 : f32 to vector<1x256xf32>
    %214 = arith.addf %208, %213 : vector<1x256xf32>
    %215 = vector.extract_strided_slice %10 {offsets = [3, 0], sizes = [1, 256], strides = [1, 1]} : vector<4x256xf32> to vector<1x256xf32>
    %216 = arith.subf %214, %215 : vector<1x256xf32>
    %217 = math.absf %216 : vector<1x256xf32>
    %218 = arith.addf %169, %217 : vector<1x256xf32>
    %219 = vector.shape_cast %218 : vector<1x256xf32> to vector<1x1x256xf32>
    %cst_80 = arith.constant dense<0.000000e+00> : vector<1xf32>
    %220 = vector.multi_reduction <add>, %219, %cst_80 [1, 2] : vector<1x1x256xf32> to vector<1xf32>
    %221 = vector.shape_cast %220 : vector<1xf32> to vector<1x1x1xf32>
    %222 = vector.extract %221[0, 0, 0] : f32 from vector<1x1x1xf32>
    %cst_81 = arith.constant 9.765625E-4 : f32
    %223 = arith.mulf %222, %cst_81 : f32
    %224 = arith.mulf %7, %223 : f32
    %cst_82 = arith.constant 0.000000e+00 : f32
    %225 = arith.addf %cst_82, %224 : f32
    %226 = vector.broadcast %225 : f32 to vector<1x8x128xf32>
    %c0_83 = arith.constant 0 : index
    %c0_84 = arith.constant 0 : index
    %c0_85 = arith.constant 0 : index
    %227 = vector.load %arg9[%c0_83, %c0_84, %c0_85] : memref<1x8x128xf32, #tpu.memory_space<vmem>>, vector<1x8x128xf32>
    tpu.vector_store %arg9[%c0_83, %c0_84, %c0_85], %226 {strides = array<i32>} : memref<1x8x128xf32, #tpu.memory_space<vmem>>, vector<1x8x128xf32>,
    return
  }
  func.func @transform_0(%arg0: i32) -> (i32, i32) {
    %c0_i32 = arith.constant 0 : i32
    %c0_i32_0 = arith.constant 0 : i32
    %c0_i32_1 = arith.constant 0 : i32
    return %c0_i32, %c0_i32_0 : i32, i32
  }
  func.func @transform_1(%arg0: i32) -> (i32, i32) {
    %c0_i32 = arith.constant 0 : i32
    %c0_i32_0 = arith.constant 0 : i32
    %c0_i32_1 = arith.constant 0 : i32
    return %c0_i32, %c0_i32_0 : i32, i32
  }
  func.func @transform_2(%arg0: i32) -> (i32, i32) {
    %c0_i32 = arith.constant 0 : i32
    %c0_i32_0 = arith.constant 0 : i32
    %c0_i32_1 = arith.constant 0 : i32
    return %c0_i32, %c0_i32_0 : i32, i32
  }
  func.func @transform_3(%arg0: i32) -> (i32, i32) {
    %c0_i32 = arith.constant 0 : i32
    %c0_i32_0 = arith.constant 0 : i32
    %c0_i32_1 = arith.constant 0 : i32
    return %c0_i32, %c0_i32_0 : i32, i32
  }
  func.func @transform_4(%arg0: i32) -> i32 {
    %c0_i32 = arith.constant 0 : i32
    %c0_i32_0 = arith.constant 0 : i32
    return %c0_i32 : i32
  }
  func.func @transform_5(%arg0: i32) -> (i32, i32, i32) {
    %c0_i32 = arith.constant 0 : i32
    %c0_i32_0 = arith.constant 0 : i32
    %c0_i32_1 = arith.constant 0 : i32
    return %arg0, %c0_i32, %c0_i32_0 : i32, i32, i32
  }
  func.func @transform_6(%arg0: i32) -> (i32, i32, i32) {
    %c0_i32 = arith.constant 0 : i32
    %c0_i32_0 = arith.constant 0 : i32
    %c0_i32_1 = arith.constant 0 : i32
    return %arg0, %c0_i32, %c0_i32_0 : i32, i32, i32
  }
  func.func @transform_7(%arg0: i32) -> (i32, i32, i32) {
    %c0_i32 = arith.constant 0 : i32
    %c0_i32_0 = arith.constant 0 : i32
    %c0_i32_1 = arith.constant 0 : i32
    return %arg0, %c0_i32, %c0_i32_0 : i32, i32, i32
  }
  func.func @transform_8(%arg0: i32) -> (i32, i32, i32) {
    %c0_i32 = arith.constant 0 : i32
    %c0_i32_0 = arith.constant 0 : i32
    %c0_i32_1 = arith.constant 0 : i32
    return %arg0, %c0_i32, %c0_i32_0 : i32, i32, i32
  }
}

</mosaic_0001>

<llo_original>
// kernel: tpu_custom_call.1
$region0: #{tpu_custom_call.1}
  #allocation0 [shape = 'u32[]', space=smem, size = 0x4, offset = 0x4, fixed_abs, tag = 'smem constant byte address 0x4 - core index']
  #allocation1 [shape = 'u32[72,128]{1,0:T(1,128)}', space=vmem, size = 0x9000, scoped, tag = 'internal scratch']
  %s0 = inlined_call_operand.hbm [shape: f32[2,3], index: 0, kind: input, shape index: {}]
  %s1 = inlined_call_operand.hbm [shape: f32[2,4], index: 1, kind: input, shape index: {}]
  %s2 = inlined_call_operand.hbm [shape: f32[4,4], index: 2, kind: input, shape index: {}]
  %s3 = inlined_call_operand.hbm [shape: f32[4,4], index: 3, kind: input, shape index: {}]
  %s4 = inlined_call_operand.vmem [shape: f32[4], index: 4, kind: input, shape index: {}]
  %s5 = inlined_call_operand.hbm [shape: bf16[2,4,256], index: 5, kind: input, shape index: {}]
  %s6 = inlined_call_operand.hbm [shape: bf16[2,4,256], index: 6, kind: input, shape index: {}]
  %s7 = inlined_call_operand.hbm [shape: bf16[2,4,256], index: 7, kind: input, shape index: {}]
  %s8 = inlined_call_operand.hbm [shape: f32[2,8,128], index: 8, kind: output, shape index: {}]
  %s9 = sld [smem:[#allocation0]]
  $region97: #{tpu_custom_call.1} parent=0
    _
  %s11 = ssub.s32 1, %s9
  %s12 = scalar_select 0, %s11, %s9
  $region1: #{tpu_custom_call.1} parent=0
    #allocation2 [shape = 'u8[1024]{0}', space=smem, size = 0x400, scoped, tag = 'input window, operand 0, single buffered']
    #allocation3 [shape = 's32[2]{0}', space=sflag, size = 0x8, scoped, tag = 'scoped memory for tpu_custom_call.1']
    #allocation4 [shape = 's32[2]{0}', space=sflag, size = 0x8, scoped, tag = 'scoped memory for tpu_custom_call.1']
    #allocation5 [shape = 's32[2]{0}', space=sflag, size = 0x8, scoped, tag = 'scoped memory for tpu_custom_call.1']
    #allocation6 [shape = 's32[2]{0}', space=sflag, size = 0x8, scoped, tag = 'scoped memory for tpu_custom_call.1']
    #allocation7 [shape = 'u8[1024]{0}', space=smem, size = 0x400, scoped, tag = 'input window, operand 1, single buffered']
    #allocation8 [shape = 's32[1]{0}', space=sflag, size = 0x4, scoped, tag = 'scoped memory for tpu_custom_call.1']
    #allocation9 [shape = 'u8[2048]{0}', space=smem, size = 0x800, scoped, tag = 'input window, operand 2, single buffered']
    #allocation10 [shape = 'u8[2048]{0}', space=smem, size = 0x800, scoped, tag = 'input window, operand 3, single buffered']
    #allocation11 [shape = 's32[1]{0}', space=sflag, size = 0x4, scoped, tag = 'scoped memory for tpu_custom_call.1']
    #allocation12 [shape = 'u8[512]{0}', space=smem, size = 0x200, scoped, tag = 'input window, operand 4, single buffered']
    #allocation13 [shape = 'u8[4096]{0}', space=vmem, size = 0x1000, scoped, tag = 'input window, operand 5']
    #allocation14 [shape = 'u8[4096]{0}', space=vmem, size = 0x1000, scoped, tag = 'input window, operand 6']
    #allocation15 [shape = 's32[2]{0}', space=sflag, size = 0x8, scoped, tag = 'scoped memory for tpu_custom_call.1']
    #allocation16 [shape = 'u8[4096]{0}', space=vmem, size = 0x1000, scoped, tag = 'input window, operand 7']
    #allocation17 [shape = 'u8[8192]{0}', space=vmem, size = 0x2000, scoped, tag = 'output window, operand 0']
    %13 = vsyncpa [#allocation5], 0
    %14 = vsyncpa [#allocation8], 0
    %15 = vsyncpa [#allocation11], 0
    %16 = vsyncpa [#allocation6], 0
    %17 = vsyncpa [#allocation3], 0
    %s18 = scalar_lea.sflag [#allocation3], 1
    %19 = vsyncpa %s18, 0
    %20 = vsyncpa [#allocation15], 0
    %s21 = scalar_lea.sflag [#allocation15], 1
    %22 = vsyncpa %s21, 0
    %23 = vsyncpa [#allocation4], 0
    %s24 = scalar_lea.sflag [#allocation4], 1
    %25 = vsyncpa %s24, 0
    loop: start=0, step=1, limit=4
    $region2: #{tpu_custom_call.1} parent=1 // loop_pre_header
      _
    $region3: #{tpu_custom_call.1} parent=1 // loop_header
      %s27 = sphi 0, %s31
      %p28 = scmp.ge.s32.totalorder %s27, 4
      %s35 = sphi 0, %s35
      %s37 = sphi 0, %s35
      %s38 = sphi 0, %s37
      %s52 = sphi 0, %s38
      %s56 = sphi 0, %s56
      %s58 = sphi 0, %s56
      %s59 = sphi 0, %s58
      %s73 = sphi 0, %s59
      %s77 = sphi 0, %s77
      %s79 = sphi 0, %s77
      %s80 = sphi 0, %s79
      %s94 = sphi 0, %s80
      %s98 = sphi 0, %s98
      %s100 = sphi 0, %s98
      %s101 = sphi 0, %s100
      %s115 = sphi 0, %s101
      %s119 = sphi 0, %s119
      %s121 = sphi 0, %s119
      %s122 = sphi 0, %s121
      %s136 = sphi 0, %s122
      %s142 = sphi 0, %s144
      %s145 = sphi 0, %s142
      %s146 = sphi 0, %s145
      %s162 = sphi 0, %s146
      %s168 = sphi 0, %s170
      %s171 = sphi 0, %s168
      %s172 = sphi 0, %s171
      %s188 = sphi 0, %s172
      %s194 = sphi 0, %s196
      %s197 = sphi 0, %s194
      %s198 = sphi 0, %s197
      %s214 = sphi 0, %s198
      %s220 = sphi 0, %s222
      %s223 = sphi 0, %s220
      %s224 = sphi 0, %s223
      %s240 = sphi 0, %s224
    $region4: #{tpu_custom_call.1} parent=1 // loop_header_branch
      %30 = sbr.rel (%p28) target = $region8
    $region5: #{tpu_custom_call.1} parent=1 // loop_body
      %s32 = ssub.s32 %s27, 1
      %s33 = ssub.s32 %s27, 2
      %s34 = sadd.s32 %s27, 1
      %s36 = sadd.s32 %s35, 1
      %p39 = scmp.eq.s32.totalorder %s27, 1
      %p40 = scmp.ne.s32.totalorder %s35, %s37
      %p41 = scmp.eq.s32.totalorder %s27, 0
      %p42 = por %p40, %p41
      %p43 = scmp.ne.s32.totalorder %s35, %s37
      %p44 = scmp.eq.s32.totalorder %s32, 1
      %p45 = por %p43, %p44
      %p46 = scmp.ne.s32.totalorder %s37, %s38
      %p47 = scmp.eq.s32.totalorder %s32, 0
      %p48 = por %p46, %p47
      %p49 = scmp.ne.s32.totalorder %s37, %s38
      %p50 = scmp.eq.s32.totalorder %s33, 1
      %p51 = por %p49, %p50
      %p53 = scmp.ne.s32.totalorder %s38, %s52
      %p54 = scmp.eq.s32.totalorder %s33, 0
      %p55 = por %p53, %p54
      %s57 = sadd.s32 %s56, 1
      %p60 = scmp.eq.s32.totalorder %s27, 1
      %p61 = scmp.ne.s32.totalorder %s56, %s58
      %p62 = scmp.eq.s32.totalorder %s27, 0
      %p63 = por %p61, %p62
      %p64 = scmp.ne.s32.totalorder %s56, %s58
      %p65 = scmp.eq.s32.totalorder %s32, 1
      %p66 = por %p64, %p65
      %p67 = scmp.ne.s32.totalorder %s58, %s59
      %p68 = scmp.eq.s32.totalorder %s32, 0
      %p69 = por %p67, %p68
      %p70 = scmp.ne.s32.totalorder %s58, %s59
      %p71 = scmp.eq.s32.totalorder %s33, 1
      %p72 = por %p70, %p71
      %p74 = scmp.ne.s32.totalorder %s59, %s73
      %p75 = scmp.eq.s32.totalorder %s33, 0
      %p76 = por %p74, %p75
      %s78 = sadd.s32 %s77, 1
      %p81 = scmp.eq.s32.totalorder %s27, 1
      %p82 = scmp.ne.s32.totalorder %s77, %s79
      %p83 = scmp.eq.s32.totalorder %s27, 0
      %p84 = por %p82, %p83
      %p85 = scmp.ne.s32.totalorder %s77, %s79
      %p86 = scmp.eq.s32.totalorder %s32, 1
      %p87 = por %p85, %p86
      %p88 = scmp.ne.s32.totalorder %s79, %s80
      %p89 = scmp.eq.s32.totalorder %s32, 0
      %p90 = por %p88, %p89
      %p91 = scmp.ne.s32.totalorder %s79, %s80
      %p92 = scmp.eq.s32.totalorder %s33, 1
      %p93 = por %p91, %p92
      %p95 = scmp.ne.s32.totalorder %s80, %s94
      %p96 = scmp.eq.s32.totalorder %s33, 0
      %p97 = por %p95, %p96
      %s99 = sadd.s32 %s98, 1
      %p102 = scmp.eq.s32.totalorder %s27, 1
      %p103 = scmp.ne.s32.totalorder %s98, %s100
      %p104 = scmp.eq.s32.totalorder %s27, 0
      %p105 = por %p103, %p104
      %p106 = scmp.ne.s32.totalorder %s98, %s100
      %p107 = scmp.eq.s32.totalorder %s32, 1
      %p108 = por %p106, %p107
      %p109 = scmp.ne.s32.totalorder %s100, %s101
      %p110 = scmp.eq.s32.totalorder %s32, 0
      %p111 = por %p109, %p110
      %p112 = scmp.ne.s32.totalorder %s100, %s101
      %p113 = scmp.eq.s32.totalorder %s33, 1
      %p114 = por %p112, %p113
      %p116 = scmp.ne.s32.totalorder %s101, %s115
      %p117 = scmp.eq.s32.totalorder %s33, 0
      %p118 = por %p116, %p117
      %s120 = sadd.s32 %s119, 1
      %p123 = scmp.eq.s32.totalorder %s27, 1
      %p124 = scmp.ne.s32.totalorder %s119, %s121
      %p125 = scmp.eq.s32.totalorder %s27, 0
      %p126 = por %p124, %p125
      %p127 = scmp.ne.s32.totalorder %s119, %s121
      %p128 = scmp.eq.s32.totalorder %s32, 1
      %p129 = por %p127, %p128
      %p130 = scmp.ne.s32.totalorder %s121, %s122
      %p131 = scmp.eq.s32.totalorder %s32, 0
      %p132 = por %p130, %p131
      %p133 = scmp.ne.s32.totalorder %s121, %s122
      %p134 = scmp.eq.s32.totalorder %s33, 1
      %p135 = por %p133, %p134
      %p137 = scmp.ne.s32.totalorder %s122, %s136
      %p138 = scmp.eq.s32.totalorder %s33, 0
      %p139 = por %p137, %p138
      %s140 = ssub.s32 %s27, %s34
      %p141 = scmp.eq.s32.totalorder %s140, 0
      %s143 = sadd.s32 %s142, 1
      %s144 = scalar_select %p141, %s142, %s143
      %p147 = pneg %p141
      %p148 = scmp.eq.s32.totalorder %s27, 1
      %p149 = por %p147, %p148
      %p150 = scmp.ne.s32.totalorder %s142, %s145
      %p151 = scmp.eq.s32.totalorder %s27, 0
      %p152 = por %p150, %p151
      %p153 = scmp.ne.s32.totalorder %s142, %s145
      %p154 = scmp.eq.s32.totalorder %s32, 1
      %p155 = por %p153, %p154
      %p156 = scmp.ne.s32.totalorder %s145, %s146
      %p157 = scmp.eq.s32.totalorder %s32, 0
      %p158 = por %p156, %p157
      %p159 = scmp.ne.s32.totalorder %s145, %s146
      %p160 = scmp.eq.s32.totalorder %s33, 1
      %p161 = por %p159, %p160
      %p163 = scmp.ne.s32.totalorder %s146, %s162
      %p164 = scmp.eq.s32.totalorder %s33, 0
      %p165 = por %p163, %p164
      %s166 = ssub.s32 %s27, %s34
      %p167 = scmp.eq.s32.totalorder %s166, 0
      %s169 = sadd.s32 %s168, 1
      %s170 = scalar_select %p167, %s168, %s169
      %p173 = pneg %p167
      %p174 = scmp.eq.s32.totalorder %s27, 1
      %p175 = por %p173, %p174
      %p176 = scmp.ne.s32.totalorder %s168, %s171
      %p177 = scmp.eq.s32.totalorder %s27, 0
      %p178 = por %p176, %p177
      %p179 = scmp.ne.s32.totalorder %s168, %s171
      %p180 = scmp.eq.s32.totalorder %s32, 1
      %p181 = por %p179, %p180
      %p182 = scmp.ne.s32.totalorder %s171, %s172
      %p183 = scmp.eq.s32.totalorder %s32, 0
      %p184 = por %p182, %p183
      %p185 = scmp.ne.s32.totalorder %s171, %s172
      %p186 = scmp.eq.s32.totalorder %s33, 1
      %p187 = por %p185, %p186
      %p189 = scmp.ne.s32.totalorder %s172, %s188
      %p190 = scmp.eq.s32.totalorder %s33, 0
      %p191 = por %p189, %p190
      %s192 = ssub.s32 %s27, %s34
      %p193 = scmp.eq.s32.totalorder %s192, 0
      %s195 = sadd.s32 %s194, 1
      %s196 = scalar_select %p193, %s194, %s195
      %p199 = pneg %p193
      %p200 = scmp.eq.s32.totalorder %s27, 1
      %p201 = por %p199, %p200
      %p202 = scmp.ne.s32.totalorder %s194, %s197
      %p203 = scmp.eq.s32.totalorder %s27, 0
      %p204 = por %p202, %p203
      %p205 = scmp.ne.s32.totalorder %s194, %s197
      %p206 = scmp.eq.s32.totalorder %s32, 1
      %p207 = por %p205, %p206
      %p208 = scmp.ne.s32.totalorder %s197, %s198
      %p209 = scmp.eq.s32.totalorder %s32, 0
      %p210 = por %p208, %p209
      %p211 = scmp.ne.s32.totalorder %s197, %s198
      %p212 = scmp.eq.s32.totalorder %s33, 1
      %p213 = por %p211, %p212
      %p215 = scmp.ne.s32.totalorder %s198, %s214
      %p216 = scmp.eq.s32.totalorder %s33, 0
      %p217 = por %p215, %p216
      %s218 = ssub.s32 %s27, %s34
      %p219 = scmp.eq.s32.totalorder %s218, 0
      %s221 = sadd.s32 %s220, 1
      %s222 = scalar_select %p219, %s220, %s221
      %p225 = pneg %p219
      %p226 = scmp.eq.s32.totalorder %s27, 1
      %p227 = por %p225, %p226
      %p228 = scmp.ne.s32.totalorder %s220, %s223
      %p229 = scmp.eq.s32.totalorder %s27, 0
      %p230 = por %p228, %p229
      %p231 = scmp.ne.s32.totalorder %s220, %s223
      %p232 = scmp.eq.s32.totalorder %s32, 1
      %p233 = por %p231, %p232
      %p234 = scmp.ne.s32.totalorder %s223, %s224
      %p235 = scmp.eq.s32.totalorder %s32, 0
      %p236 = por %p234, %p235
      %p237 = scmp.ne.s32.totalorder %s223, %s224
      %p238 = scmp.eq.s32.totalorder %s33, 1
      %p239 = por %p237, %p238
      %p241 = scmp.ne.s32.totalorder %s224, %s240
      %p242 = scmp.eq.s32.totalorder %s33, 0
      %p243 = por %p241, %p242
      %p244 = scmp.le.s32.totalorder 1, %s27
      %p245 = scmp.lt.s32.totalorder %s27, 3
      %p246 = pnand %p244, %p245
      %p247 = pneg %p246
      // Predicated region
      $region9: #{tpu_custom_call.1} parent=5 // pred_check
        _
      $region10: #{tpu_custom_call.1} parent=5 // pred_check_branch
        %249 = sbr.rel (%p246) target = $region12
      $region11: #{tpu_custom_call.1} parent=5 // pred_region
        %s250 = ssub.s32 %s27, 1
        // Predicated region
        $region13: #{tpu_custom_call.1} parent=11 // pred_check
          %p251 = pneg %p48
        $region14: #{tpu_custom_call.1} parent=11 // pred_check_branch
          %253 = sbr.rel (%p251) target = $region16
        $region15: #{tpu_custom_call.1} parent=11 // pred_region
          %255 = vsyncadd [#allocation5], 0
          %s257 = sshll.u32 %s0, 4
          %s258 = int_to_ptr.hbm [resolvable:$true] %s257
          %260 = dma.hbm_to_smem %s258, 32, [#allocation2], [#allocation5]
        $region16: #{tpu_custom_call.1} parent=11 // pred_fallthru
          _
        // Predicated region
        $region17: #{tpu_custom_call.1} parent=11 // pred_check
          %p261 = pneg %p69
        $region18: #{tpu_custom_call.1} parent=11 // pred_check_branch
          %263 = sbr.rel (%p261) target = $region20
        $region19: #{tpu_custom_call.1} parent=11 // pred_region
          %265 = vsyncadd [#allocation8], 0
          %s267 = sshll.u32 %s1, 4
          %s268 = int_to_ptr.hbm [resolvable:$true] %s267
          %270 = dma.hbm_to_smem %s268, 32, [#allocation7], [#allocation8]
        $region20: #{tpu_custom_call.1} parent=11 // pred_fallthru
          _
        // Predicated region
        $region21: #{tpu_custom_call.1} parent=11 // pred_check
          %p271 = pneg %p90
        $region22: #{tpu_custom_call.1} parent=11 // pred_check_branch
          %273 = sbr.rel (%p271) target = $region24
        $region23: #{tpu_custom_call.1} parent=11 // pred_region
          %275 = vsyncadd [#allocation8], 0
          %s277 = sshll.u32 %s2, 4
          %s278 = int_to_ptr.hbm [resolvable:$true] %s277
          %280 = dma.hbm_to_smem %s278, 64, [#allocation9], [#allocation8]
        $region24: #{tpu_custom_call.1} parent=11 // pred_fallthru
          _
        // Predicated region
        $region25: #{tpu_custom_call.1} parent=11 // pred_check
          %p281 = pneg %p111
        $region26: #{tpu_custom_call.1} parent=11 // pred_check_branch
          %283 = sbr.rel (%p281) target = $region28
        $region27: #{tpu_custom_call.1} parent=11 // pred_region
          %285 = vsyncadd [#allocation11], 0
          %s287 = sshll.u32 %s3, 4
          %s288 = int_to_ptr.hbm [resolvable:$true] %s287
          %290 = dma.hbm_to_smem %s288, 64, [#allocation10], [#allocation11]
        $region28: #{tpu_custom_call.1} parent=11 // pred_fallthru
          _
        // Predicated region
        $region29: #{tpu_custom_call.1} parent=11 // pred_check
          %p291 = pneg %p132
        $region30: #{tpu_custom_call.1} parent=11 // pred_check_branch
          %293 = sbr.rel (%p291) target = $region32
        $region31: #{tpu_custom_call.1} parent=11 // pred_region
          %295 = vsyncadd [#allocation6], 0
          %s297 = sshll.u32 %s4, 4
          %s298 = int_to_ptr.vmem [resolvable:$true] %s297
          %300 = dma.vmem_to_smem %s298, 16, [#allocation12], [#allocation6]
        $region32: #{tpu_custom_call.1} parent=11 // pred_fallthru
          _
      $region12: #{tpu_custom_call.1} parent=5 // pred_fallthru
        _
      %p301 = scmp.lt.s32.totalorder %s27, 2
      // Predicated region
      $region33: #{tpu_custom_call.1} parent=5 // pred_check
        %p302 = pneg %p301
      $region34: #{tpu_custom_call.1} parent=5 // pred_check_branch
        %304 = sbr.rel (%p302) target = $region36
      $region35: #{tpu_custom_call.1} parent=5 // pred_region
        // Predicated region
        $region37: #{tpu_custom_call.1} parent=35 // pred_check
          %p305 = pneg %p152
        $region38: #{tpu_custom_call.1} parent=35 // pred_check_branch
          %307 = sbr.rel (%p305) target = $region40
        $region39: #{tpu_custom_call.1} parent=35 // pred_region
          %s308 = sand.u32 %s142, 1
          %s309 = scalar_lea.sflag [#allocation3], %s308
          %s310 = sand.u32 %s142, 1
          %s311 = smul.addr %s310, 4
          %s312 = scalar_lea.vmem [#allocation13], %s311
          %314 = vsyncadd %s309, 0
          %s315 = smul.addr %s27, 2
          %s316 = smul.addr %s315, 2
          %s317 = scalar_lea.hbm %s5, %s316
          %s319 = sshll.u32 %s317, 4
          %s320 = int_to_ptr.hbm [resolvable:$true] %s319
          %s321 = sshll.u32 %s312, 4
          %s322 = int_to_ptr.vmem [resolvable:$true] %s321
          %324 = dma.hbm_to_vmem [thread:$0]  %s320, 64, %s322, %s309
        $region40: #{tpu_custom_call.1} parent=35 // pred_fallthru
          _
        // Predicated region
        $region41: #{tpu_custom_call.1} parent=35 // pred_check
          %p325 = pneg %p178
        $region42: #{tpu_custom_call.1} parent=35 // pred_check_branch
          %327 = sbr.rel (%p325) target = $region44
        $region43: #{tpu_custom_call.1} parent=35 // pred_region
          %s328 = sand.u32 %s27, 1
          %s329 = scalar_lea.sflag [#allocation15], %s328
          %s330 = sand.u32 %s168, 1
          %s331 = smul.addr %s330, 4
          %s332 = scalar_lea.vmem [#allocation14], %s331
          %334 = vsyncadd %s329, 0
          %s335 = smul.addr %s27, 2
          %s336 = smul.addr %s335, 2
          %s337 = scalar_lea.hbm %s6, %s336
          %s339 = sshll.u32 %s337, 4
          %s340 = int_to_ptr.hbm [resolvable:$true] %s339
          %s341 = sshll.u32 %s332, 4
          %s342 = int_to_ptr.vmem [resolvable:$true] %s341
          %344 = dma.hbm_to_vmem [thread:$0]  %s340, 64, %s342, %s329
        $region44: #{tpu_custom_call.1} parent=35 // pred_fallthru
          _
        // Predicated region
        $region45: #{tpu_custom_call.1} parent=35 // pred_check
          %p345 = pneg %p204
        $region46: #{tpu_custom_call.1} parent=35 // pred_check_branch
          %347 = sbr.rel (%p345) target = $region48
        $region47: #{tpu_custom_call.1} parent=35 // pred_region
          %s348 = sand.u32 %s27, 1
          %s349 = scalar_lea.sflag [#allocation15], %s348
          %s350 = sand.u32 %s194, 1
          %s351 = smul.addr %s350, 4
          %s352 = scalar_lea.vmem [#allocation16], %s351
          %354 = vsyncadd %s349, 0
          %s355 = smul.addr %s27, 2
          %s356 = smul.addr %s355, 2
          %s357 = scalar_lea.hbm %s7, %s356
          %s359 = sshll.u32 %s357, 4
          %s360 = int_to_ptr.hbm [resolvable:$true] %s359
          %s361 = sshll.u32 %s352, 4
          %s362 = int_to_ptr.vmem [resolvable:$true] %s361
          %364 = dma.hbm_to_vmem [thread:$0]  %s360, 64, %s362, %s349
        $region48: #{tpu_custom_call.1} parent=35 // pred_fallthru
          _
      $region36: #{tpu_custom_call.1} parent=5 // pred_fallthru
        _
      %p365 = scmp.le.s32.totalorder 1, %s27
      %p366 = scmp.lt.s32.totalorder %s27, 3
      %p367 = pnand %p365, %p366
      %p368 = pneg %p367
      // Predicated region
      $region49: #{tpu_custom_call.1} parent=5 // pred_check
        _
      $region50: #{tpu_custom_call.1} parent=5 // pred_check_branch
        %370 = sbr.rel (%p367) target = $region52
      $region51: #{tpu_custom_call.1} parent=5 // pred_region
        %s371 = ssub.s32 %s27, 1
        // Predicated region
        $region53: #{tpu_custom_call.1} parent=51 // pred_check
          %p372 = pneg %p48
        $region54: #{tpu_custom_call.1} parent=51 // pred_check_branch
          %374 = sbr.rel (%p372) target = $region56
        $region55: #{tpu_custom_call.1} parent=51 // pred_region
          %376 = dma.done [#allocation5], 32
        $region56: #{tpu_custom_call.1} parent=51 // pred_fallthru
          _
        // Predicated region
        $region57: #{tpu_custom_call.1} parent=51 // pred_check
          %p377 = pneg %p69
        $region58: #{tpu_custom_call.1} parent=51 // pred_check_branch
          %379 = sbr.rel (%p377) target = $region60
        $region59: #{tpu_custom_call.1} parent=51 // pred_region
          %381 = dma.done [#allocation8], 32
        $region60: #{tpu_custom_call.1} parent=51 // pred_fallthru
          _
        // Predicated region
        $region61: #{tpu_custom_call.1} parent=51 // pred_check
          %p382 = pneg %p90
        $region62: #{tpu_custom_call.1} parent=51 // pred_check_branch
          %384 = sbr.rel (%p382) target = $region64
        $region63: #{tpu_custom_call.1} parent=51 // pred_region
          %386 = dma.done [#allocation8], 64
        $region64: #{tpu_custom_call.1} parent=51 // pred_fallthru
          _
        // Predicated region
        $region65: #{tpu_custom_call.1} parent=51 // pred_check
          %p387 = pneg %p111
        $region66: #{tpu_custom_call.1} parent=51 // pred_check_branch
          %389 = sbr.rel (%p387) target = $region68
        $region67: #{tpu_custom_call.1} parent=51 // pred_region
          %391 = dma.done [#allocation11], 64
        $region68: #{tpu_custom_call.1} parent=51 // pred_fallthru
          _
        // Predicated region
        $region69: #{tpu_custom_call.1} parent=51 // pred_check
          %p392 = pneg %p132
        $region70: #{tpu_custom_call.1} parent=51 // pred_check_branch
          %394 = sbr.rel (%p392) target = $region72
        $region71: #{tpu_custom_call.1} parent=51 // pred_region
          %396 = dma.done [#allocation6], 16
        $region72: #{tpu_custom_call.1} parent=51 // pred_fallthru
          _
        %s397 = sand.u32 %s145, 1
        %s398 = scalar_lea.sflag [#allocation3], %s397
        %s399 = sand.u32 %s145, 1
        %s400 = smul.addr %s399, 4
        %s401 = scalar_lea.vmem [#allocation13], %s400
        // Predicated region
        $region73: #{tpu_custom_call.1} parent=51 // pred_check
          %p402 = pneg %p158
        $region74: #{tpu_custom_call.1} parent=51 // pred_check_branch
          %404 = sbr.rel (%p402) target = $region76
        $region75: #{tpu_custom_call.1} parent=51 // pred_region
          %406 = dma.done %s398, 64
        $region76: #{tpu_custom_call.1} parent=51 // pred_fallthru
          _
        %s407 = sand.u32 %s32, 1
        %s408 = scalar_lea.sflag [#allocation15], %s407
        %s409 = sand.u32 %s171, 1
        %s410 = smul.addr %s409, 4
        %s411 = scalar_lea.vmem [#allocation14], %s410
        // Predicated region
        $region77: #{tpu_custom_call.1} parent=51 // pred_check
          %p412 = pneg %p184
        $region78: #{tpu_custom_call.1} parent=51 // pred_check_branch
          %414 = sbr.rel (%p412) target = $region80
        $region79: #{tpu_custom_call.1} parent=51 // pred_region
          %416 = dma.done %s408, 64
        $region80: #{tpu_custom_call.1} parent=51 // pred_fallthru
          _
        %s417 = sand.u32 %s32, 1
        %s418 = scalar_lea.sflag [#allocation15], %s417
        %s419 = sand.u32 %s197, 1
        %s420 = smul.addr %s419, 4
        %s421 = scalar_lea.vmem [#allocation16], %s420
        // Predicated region
        $region81: #{tpu_custom_call.1} parent=51 // pred_check
          %p422 = pneg %p210
        $region82: #{tpu_custom_call.1} parent=51 // pred_check_branch
          %424 = sbr.rel (%p422) target = $region84
        $region83: #{tpu_custom_call.1} parent=51 // pred_region
          %426 = dma.done %s418, 64
        $region84: #{tpu_custom_call.1} parent=51 // pred_fallthru
          _
        %427 = sfence
        %p428 = pneg %p48
        %p429 = pneg %p45
        %p430 = pneg %p69
        %p431 = pneg %p66
        %p432 = pneg %p90
        %p433 = pneg %p87
        %p434 = pneg %p111
        %p435 = pneg %p108
        %p436 = pneg %p132
        %p437 = pneg %p129
        %s438 = sand.u32 %s145, 1
        %s439 = scalar_lea.sflag [#allocation3], %s438
        %s440 = sand.u32 %s145, 1
        %s441 = smul.addr %s440, 4
        %s442 = scalar_lea.vmem [#allocation13], %s441
        %p443 = pneg %p158
        %p444 = pneg %p155
        %s445 = sand.u32 %s32, 1
        %s446 = scalar_lea.sflag [#allocation15], %s445
        %s447 = sand.u32 %s171, 1
        %s448 = smul.addr %s447, 4
        %s449 = scalar_lea.vmem [#allocation14], %s448
        %p450 = pneg %p184
        %p451 = pneg %p181
        %s452 = sand.u32 %s32, 1
        %s453 = scalar_lea.sflag [#allocation15], %s452
        %s454 = sand.u32 %s197, 1
        %s455 = smul.addr %s454, 4
        %s456 = scalar_lea.vmem [#allocation16], %s455
        %p457 = pneg %p210
        %p458 = pneg %p207
        %p459 = pneg %p236
        %p460 = pneg %p233
        %s461 = sand.u32 %s223, 1
        %s462 = scalar_lea.sflag [#allocation4], %s461
        %s463 = sand.u32 %s223, 1
        %s464 = smul.addr %s463, 8
        %s465 = scalar_lea.vmem [#allocation17], %s464
        %s466 = smul.u32 %s32, 128
        %s467 = sld [smem:[#allocation2 + %s466]]
        %s468 = sadd.s32 %s466, 1
        %s469 = sld [smem:[#allocation2 + %s468]]
        %s470 = sadd.s32 %s466, 2
        %s471 = sld [smem:[#allocation2 + %s470]]
        %v472 = vld [vmem:[%s401] sm:$0xf]
        %v473 = vunpack.c.l.bf16 %v472
        %v474 = vld [vmem:[%s411] sm:$0xf]
        %v475 = vunpack.c.l.bf16 %v474
        %v476 = vld [vmem:[%s421] sm:$0xf]
        %v477 = vunpack.c.l.bf16 %v476
        %v478 = vstv %s467
        %v479 = vmul.f32 %v478, %v473
        %v480 = vstv %s469
        %v481 = vmul.f32 %v480, %v477
        %v482 = vadd.f32 %v479, %v481
        %s483 = sld [smem:[#allocation9]]
        %v484 = vstv %s483
        %v485 = vmul.f32 %v484, %v482
        %s486 = sld [smem:[#allocation10]]
        %v487 = vstv %s486
        %v488 = vmul.f32 %v487, %v475
        %v489 = vadd.f32 %v485, %v488
        %s490 = sld [smem:[#allocation9 + $0x80]]
        %v491 = vstv %s490
        %v492 = vmul.f32 %v491, %v482
        %v494 = vrot.slane %v492, 5
        %v495 = vrot.slane %v494, 4
        %v497 = vadd.f32 %v489, %v495
        %s498 = sld [smem:[#allocation10 + $0x80]]
        %v499 = vstv %s498
        %v500 = vmul.f32 %v499, %v475
        %v502 = vrot.slane %v500, 5
        %v503 = vrot.slane %v502, 4
        %v505 = vadd.f32 %v497, %v503
        %s506 = sld [smem:[#allocation9 + $0x100]]
        %v507 = vstv %s506
        %v508 = vmul.f32 %v507, %v482
        %v510 = vrot.slane %v508, 6
        %v511 = vrot.slane %v510, 4
        %v513 = vadd.f32 %v505, %v511
        %s514 = sld [smem:[#allocation10 + $0x100]]
        %v515 = vstv %s514
        %v516 = vmul.f32 %v515, %v475
        %v518 = vrot.slane %v516, 6
        %v519 = vrot.slane %v518, 4
        %v521 = vadd.f32 %v513, %v519
        %s522 = sld [smem:[#allocation9 + $0x180]]
        %v523 = vstv %s522
        %v524 = vmul.f32 %v523, %v482
        %v526 = vrot.slane %v524, 7
        %v527 = vrot.slane %v526, 4
        %v529 = vadd.f32 %v521, %v527
        %s530 = sld [smem:[#allocation10 + $0x180]]
        %v531 = vstv %s530
        %v532 = vmul.f32 %v531, %v475
        %v534 = vrot.slane %v532, 7
        %v535 = vrot.slane %v534, 4
        %v537 = vadd.f32 %v529, %v535
        %s538 = sld [smem:[#allocation12]]
        %s539 = sld [smem:[#allocation7 + %s466]]
        %s540 = sadd.f32 %s538, %s539
        %v541 = vstv %s540
        %v542 = vadd.f32 %v537, %v541
        %v543 = vsub.f32 %v542, %v473
        %v544 = vand.u32 2147483647, %v543
        %v545 = vadd.f32 %v544, 0.0
        %s546 = sld [smem:[#allocation9 + $0x1]]
        %v547 = vstv %s546
        %v548 = vmul.f32 %v547, %v482
        %s549 = sld [smem:[#allocation10 + $0x1]]
        %v550 = vstv %s549
        %v551 = vmul.f32 %v550, %v475
        %v552 = vadd.f32 %v548, %v551
        %s553 = sld [smem:[#allocation9 + $0x81]]
        %v554 = vstv %s553
        %v555 = vmul.f32 %v554, %v482
        %v557 = vrot.slane %v555, 5
        %v558 = vrot.slane %v557, 4
        %v560 = vadd.f32 %v552, %v558
        %s561 = sld [smem:[#allocation10 + $0x81]]
        %v562 = vstv %s561
        %v563 = vmul.f32 %v562, %v475
        %v565 = vrot.slane %v563, 5
        %v566 = vrot.slane %v565, 4
        %v568 = vadd.f32 %v560, %v566
        %s569 = sld [smem:[#allocation9 + $0x101]]
        %v570 = vstv %s569
        %v571 = vmul.f32 %v570, %v482
        %v573 = vrot.slane %v571, 6
        %v574 = vrot.slane %v573, 4
        %v576 = vadd.f32 %v568, %v574
        %s577 = sld [smem:[#allocation10 + $0x101]]
        %v578 = vstv %s577
        %v579 = vmul.f32 %v578, %v475
        %v581 = vrot.slane %v579, 6
        %v582 = vrot.slane %v581, 4
        %v584 = vadd.f32 %v576, %v582
        %s585 = sld [smem:[#allocation9 + $0x181]]
        %v586 = vstv %s585
        %v587 = vmul.f32 %v586, %v482
        %v589 = vrot.slane %v587, 7
        %v590 = vrot.slane %v589, 4
        %v592 = vadd.f32 %v584, %v590
        %s593 = sld [smem:[#allocation10 + $0x181]]
        %v594 = vstv %s593
        %v595 = vmul.f32 %v594, %v475
        %v597 = vrot.slane %v595, 7
        %v598 = vrot.slane %v597, 4
        %v600 = vadd.f32 %v592, %v598
        %s601 = sld [smem:[#allocation12 + $0x1]]
        %s602 = sld [smem:[#allocation7 + %s468]]
        %s603 = sadd.f32 %s601, %s602
        %v604 = vstv %s603
        %v605 = vadd.f32 %v600, %v604
        %v607 = vrot.slane %v473, 5
        %v608 = vrot.slane %v607, 4
        %v610 = vsub.f32 %v605, %v608
        %v611 = vand.u32 2147483647, %v610
        %v612 = vadd.f32 %v545, %v611
        %s613 = sld [smem:[#allocation9 + $0x2]]
        %v614 = vstv %s613
        %v615 = vmul.f32 %v614, %v482
        %s616 = sld [smem:[#allocation10 + $0x2]]
        %v617 = vstv %s616
        %v618 = vmul.f32 %v617, %v475
        %v619 = vadd.f32 %v615, %v618
        %s620 = sld [smem:[#allocation9 + $0x82]]
        %v621 = vstv %s620
        %v622 = vmul.f32 %v621, %v482
        %v624 = vrot.slane %v622, 5
        %v625 = vrot.slane %v624, 4
        %v627 = vadd.f32 %v619, %v625
        %s628 = sld [smem:[#allocation10 + $0x82]]
        %v629 = vstv %s628
        %v630 = vmul.f32 %v629, %v475
        %v632 = vrot.slane %v630, 5
        %v633 = vrot.slane %v632, 4
        %v635 = vadd.f32 %v627, %v633
        %s636 = sld [smem:[#allocation9 + $0x102]]
        %v637 = vstv %s636
        %v638 = vmul.f32 %v637, %v482
        %v640 = vrot.slane %v638, 6
        %v641 = vrot.slane %v640, 4
        %v643 = vadd.f32 %v635, %v641
        %s644 = sld [smem:[#allocation10 + $0x102]]
        %v645 = vstv %s644
        %v646 = vmul.f32 %v645, %v475
        %v648 = vrot.slane %v646, 6
        %v649 = vrot.slane %v648, 4
        %v651 = vadd.f32 %v643, %v649
        %s652 = sld [smem:[#allocation9 + $0x182]]
        %v653 = vstv %s652
        %v654 = vmul.f32 %v653, %v482
        %v656 = vrot.slane %v654, 7
        %v657 = vrot.slane %v656, 4
        %v659 = vadd.f32 %v651, %v657
        %s660 = sld [smem:[#allocation10 + $0x182]]
        %v661 = vstv %s660
        %v662 = vmul.f32 %v661, %v475
        %v664 = vrot.slane %v662, 7
        %v665 = vrot.slane %v664, 4
        %v667 = vadd.f32 %v659, %v665
        %s668 = sld [smem:[#allocation12 + $0x2]]
        %s669 = sld [smem:[#allocation7 + %s470]]
        %s670 = sadd.f32 %s668, %s669
        %v671 = vstv %s670
        %v672 = vadd.f32 %v667, %v671
        %v673 = vrot.slane %v473, 6
        %v674 = vrot.slane %v673, 4
        %v676 = vsub.f32 %v672, %v674
        %v677 = vand.u32 2147483647, %v676
        %v678 = vadd.f32 %v612, %v677
        %s679 = sld [smem:[#allocation9 + $0x3]]
        %v680 = vstv %s679
        %v681 = vmul.f32 %v680, %v482
        %s682 = sld [smem:[#allocation10 + $0x3]]
        %v683 = vstv %s682
        %v684 = vmul.f32 %v683, %v475
        %v685 = vadd.f32 %v681, %v684
        %s686 = sld [smem:[#allocation9 + $0x83]]
        %v687 = vstv %s686
        %v688 = vmul.f32 %v687, %v482
        %v690 = vrot.slane %v688, 5
        %v691 = vrot.slane %v690, 4
        %v693 = vadd.f32 %v685, %v691
        %s694 = sld [smem:[#allocation10 + $0x83]]
        %v695 = vstv %s694
        %v696 = vmul.f32 %v695, %v475
        %v698 = vrot.slane %v696, 5
        %v699 = vrot.slane %v698, 4
        %v701 = vadd.f32 %v693, %v699
        %s702 = sld [smem:[#allocation9 + $0x103]]
        %v703 = vstv %s702
        %v704 = vmul.f32 %v703, %v482
        %v706 = vrot.slane %v704, 6
        %v707 = vrot.slane %v706, 4
        %v709 = vadd.f32 %v701, %v707
        %s710 = sld [smem:[#allocation10 + $0x103]]
        %v711 = vstv %s710
        %v712 = vmul.f32 %v711, %v475
        %v714 = vrot.slane %v712, 6
        %v715 = vrot.slane %v714, 4
        %v717 = vadd.f32 %v709, %v715
        %s718 = sld [smem:[#allocation9 + $0x183]]
        %v719 = vstv %s718
        %v720 = vmul.f32 %v719, %v482
        %v722 = vrot.slane %v720, 7
        %v723 = vrot.slane %v722, 4
        %v725 = vadd.f32 %v717, %v723
        %s726 = sld [smem:[#allocation10 + $0x183]]
        %v727 = vstv %s726
        %v728 = vmul.f32 %v727, %v475
        %v730 = vrot.slane %v728, 7
        %v731 = vrot.slane %v730, 4
        %v733 = vadd.f32 %v725, %v731
        %s734 = sld [smem:[#allocation12 + $0x3]]
        %s735 = sadd.s32 %s466, 3
        %s736 = sld [smem:[#allocation7 + %s735]]
        %s737 = sadd.f32 %s734, %s736
        %v738 = vstv %s737
        %v739 = vadd.f32 %v733, %v738
        %v740 = vrot.slane %v473, 7
        %v741 = vrot.slane %v740, 4
        %v743 = vsub.f32 %v739, %v741
        %v744 = vand.u32 2147483647, %v743
        %v745 = vadd.f32 %v678, %v744
        %v747 = vperm.slane %v745, 0
        %v748 = vperm.slane %v745, 4
        %vm751 = vcmask 1040384
        %v752 = vsel %vm751, %v747, 0.0
        %v753 = vsel %vm751, %v748, 0.0
        %v754 = vadd.f32 %v752, %v753
        %755 = vadd.xlane.f32.xlu0 %v754
        %v756 = vpop.xlane.xlu0 %755
        %v757 = vrot.slane %v756, 4
        %v758 = vadd.f32 %v756, %v757
        %v759 = vrot.slane %v758, 2
        %v760 = vadd.f32 %v758, %v759
        %v761 = vrot.slane %v760, 1
        %v762 = vadd.f32 %v760, %v761
        %s763 = vtos %v762
        %s764 = smul.f32 %s763, 0.0009765625
        %s765 = smul.f32 %s471, %s764
        %s766 = sadd.f32 %s765, 0.0
        %v767 = vstv %s766
        %768 = vst [vmem:[%s465] sm:$0xff] %v767
        %s769 = sand.u32 %s223, 1
        %s770 = scalar_lea.sflag [#allocation4], %s769
        %s771 = sand.u32 %s223, 1
        %s772 = smul.addr %s771, 8
        %s773 = scalar_lea.vmem [#allocation17], %s772
        // Predicated region
        $region85: #{tpu_custom_call.1} parent=51 // pred_check
          %p774 = pneg %p233
        $region86: #{tpu_custom_call.1} parent=51 // pred_check_branch
          %776 = sbr.rel (%p774) target = $region88
        $region87: #{tpu_custom_call.1} parent=51 // pred_region
          %778 = vsyncadd %s770, 0
          %s779 = smul.addr %s32, 8
          %s780 = scalar_lea.hbm %s8, %s779
          %s782 = sshll.u32 %s773, 4
          %s783 = int_to_ptr.vmem [resolvable:$true] %s782
          %s784 = sshll.u32 %s780, 4
          %s785 = int_to_ptr.hbm [resolvable:$true] %s784
          %787 = dma.vmem_to_hbm [thread:$0]  %s783, 128, %s785, %s770
        $region88: #{tpu_custom_call.1} parent=51 // pred_fallthru
          _
      $region52: #{tpu_custom_call.1} parent=5 // pred_fallthru
        _
      %p788 = scmp.le.s32.totalorder 2, %s27
      // Predicated region
      $region89: #{tpu_custom_call.1} parent=5 // pred_check
        %p789 = pneg %p788
      $region90: #{tpu_custom_call.1} parent=5 // pred_check_branch
        %791 = sbr.rel (%p789) target = $region92
      $region91: #{tpu_custom_call.1} parent=5 // pred_region
        %s792 = ssub.s32 %s27, 2
        // Predicated region
        $region93: #{tpu_custom_call.1} parent=91 // pred_check
          %p793 = pneg %p239
        $region94: #{tpu_custom_call.1} parent=91 // pred_check_branch
          %795 = sbr.rel (%p793) target = $region96
        $region95: #{tpu_custom_call.1} parent=91 // pred_region
          %s796 = sand.u32 %s224, 1
          %s797 = scalar_lea.sflag [#allocation4], %s796
          %s798 = sand.u32 %s224, 1
          %s799 = smul.addr %s798, 8
          %s800 = scalar_lea.vmem [#allocation17], %s799
          %802 = dma.done %s797, 128
        $region96: #{tpu_custom_call.1} parent=91 // pred_fallthru
          _
      $region92: #{tpu_custom_call.1} parent=5 // pred_fallthru
        _
    $region6: #{tpu_custom_call.1} parent=1 // loop_footer
      %s31 = sadd.s32 1, %s27
    $region7: #{tpu_custom_call.1} parent=1 // loop_footer_branch
      %26 = sbr.rel target = $region3
    $region8: #{tpu_custom_call.1} parent=1 // loop_exit
      _
    %803 = vsyncpa [#allocation3], 1
    %s804 = scalar_lea.sflag [#allocation3], 1
    %805 = vsyncpa %s804, 1
    %806 = vsyncpa [#allocation15], 1
    %s807 = scalar_lea.sflag [#allocation15], 1
    %808 = vsyncpa %s807, 1
    %809 = vsyncpa [#allocation4], 1
    %s810 = scalar_lea.sflag [#allocation4], 1
    %811 = vsyncpa %s810, 1
    %812 = vsyncpa [#allocation5], 1
    %s813 = scalar_lea.sflag [#allocation5], 1
    %814 = vsyncpa %s813, 1
    %815 = vsyncpa [#allocation8], 1
    %816 = vsyncpa [#allocation11], 1
    %817 = vsyncpa [#allocation6], 1
    %s818 = scalar_lea.sflag [#allocation6], 1
    %819 = vsyncpa %s818, 1

</llo_original>
